<compile_context>
chip_gen: v5e
topology: v5e:2x2
jax: 0.10.0
libtpu: 0.0.40
codegen_flags: <defaults>
</compile_context>

<pallas_src>
import jax
import jax.numpy as jnp
from jax.experimental import pallas as pl
from jax.experimental.pallas import tpu as pltpu

ALPHA = 2.1
OMEGA = 14.0
EPSILON = 1.0
THETA = 0.5

LANES = 128
DEFAULT_ROW_TILE = 1024     # rows per grid step (sweet spot 512-2048 per review)
NUM_SHARDS = 2              # leading 'parallel' axis; maps to the 2 TCs on v7x


def _round_up(x, m):
    return ((x + m - 1) // m) * m


def _awl_kernel(yp_ref, y_ref, out_ref):
    j = pl.program_id(1)

    @pl.when(j == 0)
    def _():
        out_ref[...] = jnp.zeros_like(out_ref)

    yp = yp_ref[...].astype(jnp.float32)
    y = y_ref[...].astype(jnp.float32)

    A = ALPHA - y
    t = THETA / EPSILON
    pw = t ** A                       # (theta/eps)^(alpha-y)        -- EUP
    pw1 = pw * (EPSILON / THETA)      # (theta/eps)^(alpha-y-1)      -- VPU multiply

    a = OMEGA * (1.0 / (1.0 + pw)) * A * pw1 / EPSILON
    c = THETA * a - OMEGA * jnp.log1p(pw)

    d = jnp.abs(y - yp)
    case1 = OMEGA * jnp.log1p((d / EPSILON) ** A)   # |y - y_pred| <  theta
    case2 = a * d - c                               # |y - y_pred| >= theta
    loss = jnp.where(d < THETA, case1, case2)

    # VPU-only partial accumulation into the resident (8, 128) output block;
    # the expensive cross-lane reduce happens once, in the wrapper, on ~8 KiB.
    out_ref[...] += loss.reshape(-1, 8, LANES).sum(axis=0)


def adaptive_wing_loss(y_pred, y, *, row_tile=DEFAULT_ROW_TILE,
                       num_shards=NUM_SHARDS):
    # TODO(synk): mask / use_weighted_mask (max_pool2d) paths are unused under
    # the default constructor args and are not implemented in the kernel.
    assert y_pred.shape == y.shape
    numel = int(y_pred.size)
    itemsize = jnp.dtype(y_pred.dtype).itemsize
    sub = {4: 8, 2: 16, 1: 32}.get(itemsize, 8)   # min sublane tile per dtype

    rows_needed = -(-numel // LANES)
    # Clamp the row tile for small inputs so we don't pad wastefully.
    rt = min(row_tile, _round_up(-(-rows_needed // num_shards), sub))
    rt = max(sub, _round_up(rt, sub))
    rows_padded = _round_up(max(rows_needed, 1), num_shards * rt)
    steps = rows_padded // (num_shards * rt)
    padded_numel = rows_padded * LANES

    flat_p = jnp.ravel(y_pred)
    flat_y = jnp.ravel(y)
    if padded_numel != numel:
        # Pad with y_pred == y == 0 -> loss contribution is exactly 0; the mean
        # below still divides by the original numel.
        flat_p = jnp.pad(flat_p, (0, padded_numel - numel))
        flat_y = jnp.pad(flat_y, (0, padded_numel - numel))
    yp2 = flat_p.reshape(rows_padded, LANES)
    y2 = flat_y.reshape(rows_padded, LANES)

    cost = pl.CostEstimate(
        flops=15 * padded_numel,
        transcendentals=5 * padded_numel,
        bytes_accessed=2 * padded_numel * itemsize + num_shards * 8 * LANES * 4,
    )

    partial = pl.pallas_call(
        _awl_kernel,
        out_shape=jax.ShapeDtypeStruct((num_shards * 8, LANES), jnp.float32),
        grid_spec=pltpu.PrefetchScalarGridSpec(
            num_scalar_prefetch=0,
            grid=(num_shards, steps),
            in_specs=[
                pl.BlockSpec((rt, LANES), lambda p, j: (p * steps + j, 0)),
                pl.BlockSpec((rt, LANES), lambda p, j: (p * steps + j, 0)),
            ],
            out_specs=pl.BlockSpec((8, LANES), lambda p, j: (p, 0)),
        ),
        compiler_params=pltpu.CompilerParams(
            dimension_semantics=("parallel", "arbitrary"),
        ),
        cost_estimate=cost,
    )(yp2, y2)

    return jnp.sum(partial) / jnp.float32(numel)


def _reference(y_pred, y):
    y_pred = y_pred.astype(jnp.float32)
    y = y.astype(jnp.float32)
    A = ALPHA - y
    t = THETA / EPSILON
    pw = t ** A
    a = OMEGA * (1.0 / (1.0 + pw)) * A * (t ** (A - 1.0)) / EPSILON
    c = THETA * a - OMEGA * jnp.log(1.0 + pw)
    d = jnp.abs(y - y_pred)
    loss = jnp.where(d < THETA,
                     OMEGA * jnp.log(1.0 + (d / EPSILON) ** A),
                     a * d - c)
    return jnp.mean(loss)


if __name__ == "__main__":
    key = jax.random.PRNGKey(0)
    k1, k2 = jax.random.split(key)
    # NCHW heatmap-style inputs: batch=2, channels=4, spatial=16x16
    y_pred = jax.random.uniform(k1, (2, 4, 16, 16), dtype=jnp.float32)
    y = jax.random.uniform(k2, (2, 4, 16, 16), dtype=jnp.float32)

    loss = adaptive_wing_loss(y_pred, y)
    loss = jax.block_until_ready(loss)
    ref = _reference(y_pred, y)
    assert jnp.allclose(loss, ref, rtol=1e-5, atol=1e-5), (loss, ref)

    # Secondary check exercising the padding path (numel not a multiple of 8*128).
    k3, k4 = jax.random.split(k2)
    yp_odd = jax.random.uniform(k3, (2, 4, 17, 19), dtype=jnp.float32)
    y_odd = jax.random.uniform(k4, (2, 4, 17, 19), dtype=jnp.float32)
    loss2 = jax.block_until_ready(adaptive_wing_loss(yp_odd, y_odd))
    ref2 = _reference(yp_odd, y_odd)
    assert jnp.allclose(loss2, ref2, rtol=1e-5, atol=1e-5), (loss2, ref2)

    print("KERNEL_OK")
</pallas_src>

<mosaic_0001>
module attributes {stable_mosaic.version = 11 : i64} {
  func.func @_awl_kernel(%arg0: i32, %arg1: i32, %arg2: memref<8x128xf32, #tpu.memory_space<vmem>>, %arg3: memref<8x128xf32, #tpu.memory_space<vmem>>, %arg4: memref<8x128xf32, #tpu.memory_space<vmem>>) attributes {dimension_semantics = [#tpu.dimension_semantics<parallel>, #tpu.dimension_semantics<arbitrary>], iteration_bounds = array<i64: 2, 1>, scalar_prefetch = 0 : i64, scratch_operands = 0 : i64, tpu.core_type = #tpu.core_type<tc>, window_params = [{transform_indices = @transform_0, window_bounds = array<i64: 8, 128>}, {transform_indices = @transform_1, window_bounds = array<i64: 8, 128>}, {transform_indices = @transform_2, window_bounds = array<i64: 8, 128>}]} {
    %c0_i32 = arith.constant 0 : i32
    %0 = arith.cmpi eq, %arg1, %c0_i32 : i32
    %1 = arith.extui %0 : i1 to i32
    %c0_i32_0 = arith.constant 0 : i32
    %2 = arith.cmpi ne, %1, %c0_i32_0 : i32
    scf.if %2 {
      %cst_20 = arith.constant 0.000000e+00 : f32
      %45 = vector.broadcast %cst_20 : f32 to vector<8x128xf32>
      %c0_21 = arith.constant 0 : index
      %c0_22 = arith.constant 0 : index
      %46 = vector.load %arg4[%c0_21, %c0_22] : memref<8x128xf32, #tpu.memory_space<vmem>>, vector<8x128xf32>
      tpu.vector_store %arg4[%c0_21, %c0_22], %45 {strides = array<i32>} : memref<8x128xf32, #tpu.memory_space<vmem>>, vector<8x128xf32>,
    } else {
    }
    %c0 = arith.constant 0 : index
    %c0_1 = arith.constant 0 : index
    %3 = vector.load %arg2[%c0, %c0_1] : memref<8x128xf32, #tpu.memory_space<vmem>>, vector<8x128xf32>
    %c0_2 = arith.constant 0 : index
    %c0_3 = arith.constant 0 : index
    %4 = vector.load %arg3[%c0_2, %c0_3] : memref<8x128xf32, #tpu.memory_space<vmem>>, vector<8x128xf32>
    %cst = arith.constant 2.100000e+00 : f32
    %5 = vector.broadcast %cst : f32 to vector<8x128xf32>
    %6 = arith.subf %5, %4 : vector<8x128xf32>
    %cst_4 = arith.constant 5.000000e-01 : f32
    %7 = vector.broadcast %cst_4 : f32 to vector<8x128xf32>
    %8 = math.powf %7, %6 : vector<8x128xf32>
    %cst_5 = arith.constant 2.000000e+00 : f32
    %9 = vector.broadcast %cst_5 : f32 to vector<8x128xf32>
    %10 = arith.mulf %8, %9 : vector<8x128xf32>
    %cst_6 = arith.constant 1.000000e+00 : f32
    %11 = vector.broadcast %cst_6 : f32 to vector<8x128xf32>
    %12 = arith.addf %11, %8 : vector<8x128xf32>
    %cst_7 = arith.constant 1.000000e+00 : f32
    %13 = vector.broadcast %cst_7 : f32 to vector<8x128xf32>
    %14 = arith.divf %13, %12 : vector<8x128xf32>
    %cst_8 = arith.constant 1.400000e+01 : f32
    %15 = vector.broadcast %cst_8 : f32 to vector<8x128xf32>
    %16 = arith.mulf %15, %14 : vector<8x128xf32>
    %17 = arith.mulf %16, %6 : vector<8x128xf32>
    %18 = arith.mulf %17, %10 : vector<8x128xf32>
    %cst_9 = arith.constant 1.000000e+00 : f32
    %19 = vector.broadcast %cst_9 : f32 to vector<8x128xf32>
    %20 = arith.divf %18, %19 : vector<8x128xf32>
    %cst_10 = arith.constant 5.000000e-01 : f32
    %21 = vector.broadcast %cst_10 : f32 to vector<8x128xf32>
    %22 = arith.mulf %21, %20 : vector<8x128xf32>
    %23 = math.log1p %8 : vector<8x128xf32>
    %cst_11 = arith.constant 1.400000e+01 : f32
    %24 = vector.broadcast %cst_11 : f32 to vector<8x128xf32>
    %25 = arith.mulf %24, %23 : vector<8x128xf32>
    %26 = arith.subf %22, %25 : vector<8x128xf32>
    %27 = arith.subf %4, %3 : vector<8x128xf32>
    %28 = math.absf %27 : vector<8x128xf32>
    %cst_12 = arith.constant 1.000000e+00 : f32
    %29 = vector.broadcast %cst_12 : f32 to vector<8x128xf32>
    %30 = arith.divf %28, %29 : vector<8x128xf32>
    %31 = math.powf %30, %6 : vector<8x128xf32>
    %32 = math.log1p %31 : vector<8x128xf32>
    %cst_13 = arith.constant 1.400000e+01 : f32
    %33 = vector.broadcast %cst_13 : f32 to vector<8x128xf32>
    %34 = arith.mulf %33, %32 : vector<8x128xf32>
    %35 = arith.mulf %20, %28 : vector<8x128xf32>
    %36 = arith.subf %35, %26 : vector<8x128xf32>
    %cst_14 = arith.constant 5.000000e-01 : f32
    %37 = vector.broadcast %cst_14 : f32 to vector<8x128xf32>
    %38 = arith.cmpf olt, %28, %37 : vector<8x128xf32>
    %39 = arith.select %38, %34, %36 : vector<8x128xi1>, vector<8x128xf32>
    %c0_15 = arith.constant 0 : index
    %c0_16 = arith.constant 0 : index
    %40 = vector.load %arg4[%c0_15, %c0_16] : memref<8x128xf32, #tpu.memory_space<vmem>>, vector<8x128xf32>
    %41 = vector.shape_cast %39 : vector<8x128xf32> to vector<1x8x128xf32>
    %cst_17 = arith.constant dense<0.000000e+00> : vector<8x128xf32>
    %42 = vector.multi_reduction <add>, %41, %cst_17 [0] : vector<1x8x128xf32> to vector<8x128xf32>
    %43 = arith.addf %40, %42 : vector<8x128xf32>
    %c0_18 = arith.constant 0 : index
    %c0_19 = arith.constant 0 : index
    %44 = vector.load %arg4[%c0_18, %c0_19] : memref<8x128xf32, #tpu.memory_space<vmem>>, vector<8x128xf32>
    tpu.vector_store %arg4[%c0_18, %c0_19], %43 {strides = array<i32>} : memref<8x128xf32, #tpu.memory_space<vmem>>, vector<8x128xf32>,
    return
  }
  func.func @transform_0(%arg0: i32, %arg1: i32) -> (i32, i32) {
    %c1_i32 = arith.constant 1 : i32
    %0 = arith.muli %arg0, %c1_i32 : i32
    %1 = arith.addi %0, %arg1 : i32
    %c0_i32 = arith.constant 0 : i32
    %c0_i32_0 = arith.constant 0 : i32
    return %1, %c0_i32 : i32, i32
  }
  func.func @transform_1(%arg0: i32, %arg1: i32) -> (i32, i32) {
    %c1_i32 = arith.constant 1 : i32
    %0 = arith.muli %arg0, %c1_i32 : i32
    %1 = arith.addi %0, %arg1 : i32
    %c0_i32 = arith.constant 0 : i32
    %c0_i32_0 = arith.constant 0 : i32
    return %1, %c0_i32 : i32, i32
  }
  func.func @transform_2(%arg0: i32, %arg1: i32) -> (i32, i32) {
    %c0_i32 = arith.constant 0 : i32
    %c0_i32_0 = arith.constant 0 : i32
    return %arg0, %c0_i32 : i32, i32
  }
}

</mosaic_0001>

<llo_original>
// kernel: tpu_custom_call.1
$region0: #{tpu_custom_call.1}
  #allocation0 [shape = 'u32[]', space=smem, size = 0x4, offset = 0x4, fixed_abs, tag = 'smem constant byte address 0x4 - core index']
  #allocation1 [shape = 'u32[72,128]{1,0:T(1,128)}', space=vmem, size = 0x9000, scoped, tag = 'internal scratch']
  %s0 = inlined_call_operand.hbm [shape: f32[16,128], index: 0, kind: input, shape index: {}]
  %s1 = inlined_call_operand.hbm [shape: f32[16,128], index: 1, kind: input, shape index: {}]
  %s2 = inlined_call_operand.hbm [shape: f32[16,128], index: 2, kind: output, shape index: {}]
  %s3 = sld [smem:[#allocation0]]
  $region53: #{tpu_custom_call.1} parent=0
    _
  %s5 = ssub.s32 1, %s3
  %s6 = scalar_select 0, %s5, %s3
  $region1: #{tpu_custom_call.1} parent=0
    #allocation2 [shape = 'u8[8192]{0}', space=vmem, size = 0x2000, scoped, tag = 'input window, operand 0']
    #allocation3 [shape = 's32[2]{0}', space=sflag, size = 0x8, scoped, tag = 'scoped memory for tpu_custom_call.1']
    #allocation4 [shape = 's32[2]{0}', space=sflag, size = 0x8, scoped, tag = 'scoped memory for tpu_custom_call.1']
    #allocation5 [shape = 'u8[8192]{0}', space=vmem, size = 0x2000, scoped, tag = 'input window, operand 1']
    #allocation6 [shape = 's32[2]{0}', space=sflag, size = 0x8, scoped, tag = 'scoped memory for tpu_custom_call.1']
    #allocation7 [shape = 'u8[8192]{0}', space=vmem, size = 0x2000, scoped, tag = 'output window, operand 0']
    %7 = vsyncpa [#allocation3], 0
    %s8 = scalar_lea.sflag [#allocation3], 1
    %9 = vsyncpa %s8, 0
    %10 = vsyncpa [#allocation6], 0
    %s11 = scalar_lea.sflag [#allocation6], 1
    %12 = vsyncpa %s11, 0
    %13 = vsyncpa [#allocation4], 0
    %s14 = scalar_lea.sflag [#allocation4], 1
    %15 = vsyncpa %s14, 0
    loop: start=0, step=1, limit=4
    $region2: #{tpu_custom_call.1} parent=1 // loop_pre_header
      _
    $region3: #{tpu_custom_call.1} parent=1 // loop_header
      %s17 = sphi 0, %s21
      %p18 = scmp.ge.s32.totalorder %s17, 4
      %s24 = sphi 0, %s36
      %s25 = sphi 0, %s32
      %s26 = sphi 0, %s24
      %s27 = sphi 0, %s25
      %s28 = sphi 0, %s26
      %s29 = sphi 0, %s27
      %s41 = sphi 0, %s43
      %s44 = sphi 0, %s41
      %s45 = sphi 0, %s44
      %s61 = sphi 0, %s45
      %s69 = sphi 0, %s71
      %s72 = sphi 0, %s69
      %s73 = sphi 0, %s72
      %s89 = sphi 0, %s73
      %s95 = sphi 0, %s97
      %s98 = sphi 0, %s95
      %s99 = sphi 0, %s98
      %s115 = sphi 0, %s99
    $region4: #{tpu_custom_call.1} parent=1 // loop_header_branch
      %20 = sbr.rel (%p18) target = $region8
    $region5: #{tpu_custom_call.1} parent=1 // loop_body
      %s22 = ssub.s32 %s17, 1
      %s23 = ssub.s32 %s17, 2
      %s30 = sadd.s32 1, %s25
      %p31 = scmp.ge.s32.totalorder %s30, 1
      %s32 = scalar_select %p31, 0, %s30
      %s33 = sadd.s32 1, %s24
      %s34 = scalar_select %p31, %s33, %s24
      %p35 = scmp.ge.s32.totalorder %s34, 2
      %s36 = scalar_select %p35, 0, %s34
      %s37 = sadd.s32 %s24, %s25
      %s38 = sadd.s32 %s36, %s32
      %s39 = ssub.s32 %s37, %s38
      %p40 = scmp.eq.s32.totalorder %s39, 0
      %s42 = sadd.s32 %s41, 1
      %s43 = scalar_select %p40, %s41, %s42
      %p46 = pneg %p40
      %p47 = scmp.eq.s32.totalorder %s17, 1
      %p48 = por %p46, %p47
      %p49 = scmp.ne.s32.totalorder %s41, %s44
      %p50 = scmp.eq.s32.totalorder %s17, 0
      %p51 = por %p49, %p50
      %p52 = scmp.ne.s32.totalorder %s41, %s44
      %p53 = scmp.eq.s32.totalorder %s22, 1
      %p54 = por %p52, %p53
      %p55 = scmp.ne.s32.totalorder %s44, %s45
      %p56 = scmp.eq.s32.totalorder %s22, 0
      %p57 = por %p55, %p56
      %p58 = scmp.ne.s32.totalorder %s44, %s45
      %p59 = scmp.eq.s32.totalorder %s23, 1
      %p60 = por %p58, %p59
      %p62 = scmp.ne.s32.totalorder %s45, %s61
      %p63 = scmp.eq.s32.totalorder %s23, 0
      %p64 = por %p62, %p63
      %s65 = sadd.s32 %s24, %s25
      %s66 = sadd.s32 %s36, %s32
      %s67 = ssub.s32 %s65, %s66
      %p68 = scmp.eq.s32.totalorder %s67, 0
      %s70 = sadd.s32 %s69, 1
      %s71 = scalar_select %p68, %s69, %s70
      %p74 = pneg %p68
      %p75 = scmp.eq.s32.totalorder %s17, 1
      %p76 = por %p74, %p75
      %p77 = scmp.ne.s32.totalorder %s69, %s72
      %p78 = scmp.eq.s32.totalorder %s17, 0
      %p79 = por %p77, %p78
      %p80 = scmp.ne.s32.totalorder %s69, %s72
      %p81 = scmp.eq.s32.totalorder %s22, 1
      %p82 = por %p80, %p81
      %p83 = scmp.ne.s32.totalorder %s72, %s73
      %p84 = scmp.eq.s32.totalorder %s22, 0
      %p85 = por %p83, %p84
      %p86 = scmp.ne.s32.totalorder %s72, %s73
      %p87 = scmp.eq.s32.totalorder %s23, 1
      %p88 = por %p86, %p87
      %p90 = scmp.ne.s32.totalorder %s73, %s89
      %p91 = scmp.eq.s32.totalorder %s23, 0
      %p92 = por %p90, %p91
      %s93 = ssub.s32 %s24, %s36
      %p94 = scmp.eq.s32.totalorder %s93, 0
      %s96 = sadd.s32 %s95, 1
      %s97 = scalar_select %p94, %s95, %s96
      %p100 = pneg %p94
      %p101 = scmp.eq.s32.totalorder %s17, 1
      %p102 = por %p100, %p101
      %p103 = scmp.ne.s32.totalorder %s95, %s98
      %p104 = scmp.eq.s32.totalorder %s17, 0
      %p105 = por %p103, %p104
      %p106 = scmp.ne.s32.totalorder %s95, %s98
      %p107 = scmp.eq.s32.totalorder %s22, 1
      %p108 = por %p106, %p107
      %p109 = scmp.ne.s32.totalorder %s98, %s99
      %p110 = scmp.eq.s32.totalorder %s22, 0
      %p111 = por %p109, %p110
      %p112 = scmp.ne.s32.totalorder %s98, %s99
      %p113 = scmp.eq.s32.totalorder %s23, 1
      %p114 = por %p112, %p113
      %p116 = scmp.ne.s32.totalorder %s99, %s115
      %p117 = scmp.eq.s32.totalorder %s23, 0
      %p118 = por %p116, %p117
      %p119 = scmp.le.s32.totalorder 1, %s17
      %p120 = scmp.lt.s32.totalorder %s17, 3
      %p121 = pnand %p119, %p120
      %p122 = pneg %p121
      // Predicated region
      $region9: #{tpu_custom_call.1} parent=5 // pred_check
        _
      $region10: #{tpu_custom_call.1} parent=5 // pred_check_branch
        %124 = sbr.rel (%p121) target = $region12
      $region11: #{tpu_custom_call.1} parent=5 // pred_region
        %s125 = ssub.s32 %s17, 1
      $region12: #{tpu_custom_call.1} parent=5 // pred_fallthru
        _
      %p126 = scmp.lt.s32.totalorder %s17, 2
      // Predicated region
      $region13: #{tpu_custom_call.1} parent=5 // pred_check
        %p127 = pneg %p126
      $region14: #{tpu_custom_call.1} parent=5 // pred_check_branch
        %129 = sbr.rel (%p127) target = $region16
      $region15: #{tpu_custom_call.1} parent=5 // pred_region
        // Predicated region
        $region17: #{tpu_custom_call.1} parent=15 // pred_check
          %p130 = pneg %p51
        $region18: #{tpu_custom_call.1} parent=15 // pred_check_branch
          %132 = sbr.rel (%p130) target = $region20
        $region19: #{tpu_custom_call.1} parent=15 // pred_region
          %s133 = sand.u32 %s41, 1
          %s134 = scalar_lea.sflag [#allocation3], %s133
          %s135 = sand.u32 %s41, 1
          %s136 = smul.addr %s135, 8
          %s137 = scalar_lea.vmem [#allocation2], %s136
          %s138 = sadd.s32 %s24, %s25
          %140 = vsyncadd %s134, 0
          %s141 = smul.addr %s138, 8
          %s142 = scalar_lea.hbm %s0, %s141
          %s144 = sshll.u32 %s142, 4
          %s145 = int_to_ptr.hbm [resolvable:$true] %s144
          %s146 = sshll.u32 %s137, 4
          %s147 = int_to_ptr.vmem [resolvable:$true] %s146
          %149 = dma.hbm_to_vmem [thread:$0]  %s145, 128, %s147, %s134
        $region20: #{tpu_custom_call.1} parent=15 // pred_fallthru
          _
        // Predicated region
        $region21: #{tpu_custom_call.1} parent=15 // pred_check
          %p150 = pneg %p79
        $region22: #{tpu_custom_call.1} parent=15 // pred_check_branch
          %152 = sbr.rel (%p150) target = $region24
        $region23: #{tpu_custom_call.1} parent=15 // pred_region
          %s153 = sand.u32 %s69, 1
          %s154 = scalar_lea.sflag [#allocation6], %s153
          %s155 = sand.u32 %s69, 1
          %s156 = smul.addr %s155, 8
          %s157 = scalar_lea.vmem [#allocation5], %s156
          %s158 = sadd.s32 %s24, %s25
          %160 = vsyncadd %s154, 0
          %s161 = smul.addr %s158, 8
          %s162 = scalar_lea.hbm %s1, %s161
          %s164 = sshll.u32 %s162, 4
          %s165 = int_to_ptr.hbm [resolvable:$true] %s164
          %s166 = sshll.u32 %s157, 4
          %s167 = int_to_ptr.vmem [resolvable:$true] %s166
          %169 = dma.hbm_to_vmem [thread:$0]  %s165, 128, %s167, %s154
        $region24: #{tpu_custom_call.1} parent=15 // pred_fallthru
          _
      $region16: #{tpu_custom_call.1} parent=5 // pred_fallthru
        _
      %p170 = scmp.le.s32.totalorder 1, %s17
      %p171 = scmp.lt.s32.totalorder %s17, 3
      %p172 = pnand %p170, %p171
      %p173 = pneg %p172
      // Predicated region
      $region25: #{tpu_custom_call.1} parent=5 // pred_check
        _
      $region26: #{tpu_custom_call.1} parent=5 // pred_check_branch
        %175 = sbr.rel (%p172) target = $region28
      $region27: #{tpu_custom_call.1} parent=5 // pred_region
        %s176 = ssub.s32 %s17, 1
        %s177 = sand.u32 %s44, 1
        %s178 = scalar_lea.sflag [#allocation3], %s177
        %s179 = sand.u32 %s44, 1
        %s180 = smul.addr %s179, 8
        %s181 = scalar_lea.vmem [#allocation2], %s180
        // Predicated region
        $region29: #{tpu_custom_call.1} parent=27 // pred_check
          %p182 = pneg %p57
        $region30: #{tpu_custom_call.1} parent=27 // pred_check_branch
          %184 = sbr.rel (%p182) target = $region32
        $region31: #{tpu_custom_call.1} parent=27 // pred_region
          %186 = dma.done %s178, 128
        $region32: #{tpu_custom_call.1} parent=27 // pred_fallthru
          _
        %s187 = sand.u32 %s72, 1
        %s188 = scalar_lea.sflag [#allocation6], %s187
        %s189 = sand.u32 %s72, 1
        %s190 = smul.addr %s189, 8
        %s191 = scalar_lea.vmem [#allocation5], %s190
        // Predicated region
        $region33: #{tpu_custom_call.1} parent=27 // pred_check
          %p192 = pneg %p85
        $region34: #{tpu_custom_call.1} parent=27 // pred_check_branch
          %194 = sbr.rel (%p192) target = $region36
        $region35: #{tpu_custom_call.1} parent=27 // pred_region
          %196 = dma.done %s188, 128
        $region36: #{tpu_custom_call.1} parent=27 // pred_fallthru
          _
        %s197 = sand.u32 %s44, 1
        %s198 = scalar_lea.sflag [#allocation3], %s197
        %s199 = sand.u32 %s44, 1
        %s200 = smul.addr %s199, 8
        %s201 = scalar_lea.vmem [#allocation2], %s200
        %p202 = pneg %p57
        %p203 = pneg %p54
        %s204 = sand.u32 %s72, 1
        %s205 = scalar_lea.sflag [#allocation6], %s204
        %s206 = sand.u32 %s72, 1
        %s207 = smul.addr %s206, 8
        %s208 = scalar_lea.vmem [#allocation5], %s207
        %p209 = pneg %p85
        %p210 = pneg %p82
        %p211 = pneg %p111
        %p212 = pneg %p108
        %s213 = sand.u32 %s98, 1
        %s214 = scalar_lea.sflag [#allocation4], %s213
        %s215 = sand.u32 %s98, 1
        %s216 = smul.addr %s215, 8
        %s217 = scalar_lea.vmem [#allocation7], %s216
        %s218 = sadd.s32 %s26, %s27
        %s219 = sadd.s32 %s26, %s27
        %p220 = scmp.eq.s32.totalorder %s27, 0
        // Predicated region
        $region37: #{tpu_custom_call.1} parent=27 // pred_check
          %p221 = pneg %p220
        $region38: #{tpu_custom_call.1} parent=27 // pred_check_branch
          %223 = sbr.rel (%p221) target = $region40
        $region39: #{tpu_custom_call.1} parent=27 // pred_region
          %224 = vst [vmem:[%s217] sm:$0xff] 0.0
        $region40: #{tpu_custom_call.1} parent=27 // pred_fallthru
          _
        %v225 = vld [vmem:[%s181] sm:$0xff]
        %v226 = vld [vmem:[%s191] sm:$0xff]
        %v227 = vsub.f32 2.1, %v226
        %v228 = vpow.f32 0.5, %v227
        %v229 = vmul.f32 %v228, 2.0
        %v230 = vadd.f32 %v228, 1.0
        %v231 = vrcp.pop %v230
        %v232 = vmul.f32 %v230, %v231
        %v233 = vsub.f32 1.0, %v232
        %v234 = vmul.f32 %v231, %v233
        %v235 = vadd.f32 %v231, %v234
        %vm236 = vweird.f32 %v230
        %vm237 = vweird.f32 %v231
        %vm238 = vmor %vm236, %vm237
        %v239 = vsel %vm238, %v231, %v235
        %v240 = vand.u32 2147483647, %v230
        %vm241 = vcmp.eq.f32.partialorder %v240, 8.507059e+37
        %v242 = vand.u32 %v230, 2147483648
        %v243 = vor.u32 1.1754944e-38, %v242
        %v244 = vsel %vm241, %v243, %v239
        %v245 = vmul.f32 1.0, %v244
        %v246 = vmul.f32 %v245, 14.0
        %v247 = vmul.f32 %v246, %v227
        %v248 = vmul.f32 %v247, %v229
        %v249 = vmul.f32 %v248, 0.5
        %v250 = vadd.f32 %v228, 1.0
        %v251 = vlog2.pop %v250
        %v252 = vmul.f32 %v251, 0.6931472
        %v253 = vmul.f32 -0.5, %v228
        %v254 = vadd.f32 %v253, 1.0
        %v255 = vmul.f32 %v254, %v228
        %v256 = vand.u32 2147483647, %v228
        %vm257 = vcmp.lt.f32.partialorder %v256, 0.0004427343
        %v258 = vsel %vm257, %v255, %v252
        %v259 = vmul.f32 %v258, 14.0
        %v260 = vsub.f32 %v249, %v259
        %v261 = vsub.f32 %v226, %v225
        %v262 = vand.u32 2147483647, %v261
        %v263 = vpow.f32 %v262, %v227
        %v264 = vadd.f32 %v263, 1.0
        %v265 = vlog2.pop %v264
        %v266 = vmul.f32 %v265, 0.6931472
        %v267 = vmul.f32 -0.5, %v263
        %v268 = vadd.f32 %v267, 1.0
        %v269 = vmul.f32 %v268, %v263
        %v270 = vand.u32 2147483647, %v263
        %vm271 = vcmp.lt.f32.partialorder %v270, 0.0004427343
        %v272 = vsel %vm271, %v269, %v266
        %v273 = vmul.f32 %v272, 14.0
        %v274 = vmul.f32 %v248, %v262
        %v275 = vsub.f32 %v274, %v260
        %vm276 = vcmp.lt.f32.partialorder %v262, 0.5
        %v277 = vsel %vm276, %v273, %v275
        %v278 = vld [vmem:[%s217] sm:$0xff]
        %v279 = vadd.f32 %v277, 0.0
        %v280 = vadd.f32 %v278, %v279
        %281 = vst [vmem:[%s217] sm:$0xff] %v280
        %s282 = sand.u32 %s98, 1
        %s283 = scalar_lea.sflag [#allocation4], %s282
        %s284 = sand.u32 %s98, 1
        %s285 = smul.addr %s284, 8
        %s286 = scalar_lea.vmem [#allocation7], %s285
        // Predicated region
        $region41: #{tpu_custom_call.1} parent=27 // pred_check
          %p287 = pneg %p108
        $region42: #{tpu_custom_call.1} parent=27 // pred_check_branch
          %289 = sbr.rel (%p287) target = $region44
        $region43: #{tpu_custom_call.1} parent=27 // pred_region
          %291 = vsyncadd %s283, 0
          %s292 = smul.addr %s26, 8
          %s293 = scalar_lea.hbm %s2, %s292
          %s295 = sshll.u32 %s286, 4
          %s296 = int_to_ptr.vmem [resolvable:$true] %s295
          %s297 = sshll.u32 %s293, 4
          %s298 = int_to_ptr.hbm [resolvable:$true] %s297
          %300 = dma.vmem_to_hbm [thread:$0]  %s296, 128, %s298, %s283
        $region44: #{tpu_custom_call.1} parent=27 // pred_fallthru
          _
      $region28: #{tpu_custom_call.1} parent=5 // pred_fallthru
        _
      %p301 = scmp.le.s32.totalorder 2, %s17
      // Predicated region
      $region45: #{tpu_custom_call.1} parent=5 // pred_check
        %p302 = pneg %p301
      $region46: #{tpu_custom_call.1} parent=5 // pred_check_branch
        %304 = sbr.rel (%p302) target = $region48
      $region47: #{tpu_custom_call.1} parent=5 // pred_region
        %s305 = ssub.s32 %s17, 2
        // Predicated region
        $region49: #{tpu_custom_call.1} parent=47 // pred_check
          %p306 = pneg %p114
        $region50: #{tpu_custom_call.1} parent=47 // pred_check_branch
          %308 = sbr.rel (%p306) target = $region52
        $region51: #{tpu_custom_call.1} parent=47 // pred_region
          %s309 = sand.u32 %s99, 1
          %s310 = scalar_lea.sflag [#allocation4], %s309
          %s311 = sand.u32 %s99, 1
          %s312 = smul.addr %s311, 8
          %s313 = scalar_lea.vmem [#allocation7], %s312
          %315 = dma.done %s310, 128
        $region52: #{tpu_custom_call.1} parent=47 // pred_fallthru
          _
      $region48: #{tpu_custom_call.1} parent=5 // pred_fallthru
        _
    $region6: #{tpu_custom_call.1} parent=1 // loop_footer
      %s21 = sadd.s32 1, %s17
    $region7: #{tpu_custom_call.1} parent=1 // loop_footer_branch
      %16 = sbr.rel target = $region3
    $region8: #{tpu_custom_call.1} parent=1 // loop_exit
      _
    %316 = vsyncpa [#allocation3], 1
    %s317 = scalar_lea.sflag [#allocation3], 1
    %318 = vsyncpa %s317, 1
    %319 = vsyncpa [#allocation6], 1
    %s320 = scalar_lea.sflag [#allocation6], 1
    %321 = vsyncpa %s320, 1
    %322 = vsyncpa [#allocation4], 1
    %s323 = scalar_lea.sflag [#allocation4], 1
    %324 = vsyncpa %s323, 1

</llo_original>
